<compile_context>
chip_gen: v5e
topology: v5e:2x2
jax: 0.10.0
libtpu: 0.0.40
codegen_flags: <defaults>
</compile_context>

<pallas_src>
import jax
import jax.numpy as jnp
from jax.experimental import pallas as pl
from jax.experimental.pallas import tpu as pltpu


def _round_up(n, m):
    return ((n + m - 1) // m) * m


def _mlp_kernel(x_ref, w1_ref, b1_ref, w2_ref, b2_ref, w3_ref, b3_ref, o_ref):
    # fc1: contract x's feature axis against W1's in_features axis directly
    # (no explicit transpose of the (tile, in) activation block):
    #   h[hid, b] = sum_i W1[hid, i] * x[b, i]
    h = jax.lax.dot_general(
        w1_ref[...], x_ref[...],
        dimension_numbers=(((1,), (1,)), ((), ())),
        preferred_element_type=jnp.float32)                    # (hidden, tile)
    h = jnp.maximum(h + b1_ref[...], 0.0)                      # lane-dense
    # fc2
    h = jnp.dot(w2_ref[...], h, preferred_element_type=jnp.float32)
    h = jnp.maximum(h + b2_ref[...], 0.0)
    # fc3 -> (out_dim, tile); feature-major, unmasked lane-dense store.
    o = jnp.dot(w3_ref[...], h, preferred_element_type=jnp.float32)
    o_ref[...] = (o + b3_ref[...]).astype(o_ref.dtype)


def tau_init_forward(x, w1, b1, w2, b2, w3, b3, *, batch_tile=None):
    """TAU_init forward pass.

    x : (B, in_dim)              activations (row-major, as in PyTorch)
    w*: (out_features, in_feat.) weights, native nn.Linear layout
    b*: (out_features,)          biases
    Returns (B, out_dim) float32.
    """
    B, in_dim = x.shape
    hidden = w1.shape[0]
    out_dim = w3.shape[0]
    assert w1.shape == (hidden, in_dim)
    assert w2.shape == (hidden, hidden)
    assert w3.shape == (out_dim, hidden)

    # Biases as (out, 1) columns so they broadcast across the lane (batch) axis.
    b1c = jnp.reshape(b1, (hidden, 1)).astype(jnp.float32)
    b2c = jnp.reshape(b2, (hidden, 1)).astype(jnp.float32)
    b3c = jnp.reshape(b3, (out_dim, 1)).astype(jnp.float32)

    if batch_tile is None:
        if B <= 256:
            batch_tile = B                       # single grid step, no pipelining overhead
        else:
            # >= 2 tiles (v7x megacore) and large tiles (amortize ~0.35us/step).
            batch_tile = min(2048, _round_up(pl.cdiv(B, 2), 256))
    grid = (pl.cdiv(B, batch_tile),)             # uneven last block handled by Pallas

    out_fm = pl.pallas_call(
        _mlp_kernel,
        out_shape=jax.ShapeDtypeStruct((out_dim, B), jnp.float32),
        grid=grid,
        in_specs=[
            pl.BlockSpec((batch_tile, in_dim), lambda i: (i, 0)),   # x tile
            pl.BlockSpec((hidden, in_dim),     lambda i: (0, 0)),   # W1 (VMEM-resident)
            pl.BlockSpec((hidden, 1),          lambda i: (0, 0)),   # b1
            pl.BlockSpec((hidden, hidden),     lambda i: (0, 0)),   # W2
            pl.BlockSpec((hidden, 1),          lambda i: (0, 0)),   # b2
            pl.BlockSpec((out_dim, hidden),    lambda i: (0, 0)),   # W3
            pl.BlockSpec((out_dim, 1),         lambda i: (0, 0)),   # b3
        ],
        out_specs=pl.BlockSpec((out_dim, batch_tile), lambda i: (0, i)),
        compiler_params=pltpu.CompilerParams(
            # Batch tiles are independent -> shard across v7x's two TensorCores.
            dimension_semantics=("parallel",),
        ),
    )(x, w1, b1c, w2, b2c, w3, b3c)

    # Kernel output is feature-major; one tiny (out_dim x B) transpose restores
    # the module's (B, out_dim) result.
    return out_fm.T


if __name__ == "__main__":
    # Shapes implied by the module: input_dim=8, hidden_dim=16, output_dim=4.
    input_dim, hidden_dim, output_dim = 8, 16, 4

    key = jax.random.PRNGKey(0)
    kx, kx2, k1, kb1, k2, kb2, k3, kb3 = jax.random.split(key, 8)

    # Deterministic nn.Linear-style init, native (out_features, in_features) layout.
    def init_linear(kw, kb, fan_in, fan_out):
        bound = 1.0 / float(fan_in) ** 0.5
        w = jax.random.uniform(kw, (fan_out, fan_in), jnp.float32, -bound, bound)
        b = jax.random.uniform(kb, (fan_out,), jnp.float32, -bound, bound)
        return w, b

    w1, b1 = init_linear(k1, kb1, input_dim, hidden_dim)
    w2, b2 = init_linear(k2, kb2, hidden_dim, hidden_dim)
    w3, b3 = init_linear(k3, kb3, hidden_dim, output_dim)

    def reference_forward(x):
        h = jnp.maximum(x @ w1.T + b1, 0.0)
        h = jnp.maximum(h @ w2.T + b2, 0.0)
        return h @ w3.T + b3

    # Tolerance is loose enough to absorb MXU default-precision differences
    # between the Pallas kernel and the XLA reference; a layout / bias / ReLU
    # bug would produce O(0.1-1) errors and still be caught.
    TOL = 1e-2

    # --- case 1: small batch (module's natural size) -> single grid step -----
    batch = 16
    x = jax.random.normal(kx, (batch, input_dim), dtype=jnp.float32)
    out = jax.block_until_ready(tau_init_forward(x, w1, b1, w2, b2, w3, b3))
    ref = reference_forward(x)
    assert out.shape == (batch, output_dim)
    assert jnp.allclose(out, ref, atol=TOL, rtol=TOL), "kernel mismatch vs reference (case 1)"

    # --- case 2: ragged batch -> two parallel tiles, masked uneven last block -
    batch2 = 300
    x2 = jax.random.normal(kx2, (batch2, input_dim), dtype=jnp.float32)
    out2 = jax.block_until_ready(tau_init_forward(x2, w1, b1, w2, b2, w3, b3))
    ref2 = reference_forward(x2)
    assert out2.shape == (batch2, output_dim)
    assert jnp.allclose(out2, ref2, atol=TOL, rtol=TOL), "kernel mismatch vs reference (case 2)"

    print("KERNEL_OK")
</pallas_src>

<mosaic_0001>
module attributes {stable_mosaic.version = 11 : i64} {
  func.func @_mlp_kernel(%arg0: i32, %arg1: memref<16x8xf32, #tpu.memory_space<vmem>>, %arg2: memref<16x8xf32, #tpu.memory_space<vmem>>, %arg3: memref<16x1xf32, #tpu.memory_space<vmem>>, %arg4: memref<16x16xf32, #tpu.memory_space<vmem>>, %arg5: memref<16x1xf32, #tpu.memory_space<vmem>>, %arg6: memref<4x16xf32, #tpu.memory_space<vmem>>, %arg7: memref<4x1xf32, #tpu.memory_space<vmem>>, %arg8: memref<4x16xf32, #tpu.memory_space<vmem>>) attributes {dimension_semantics = [#tpu.dimension_semantics<parallel>], iteration_bounds = array<i64: 1>, scalar_prefetch = 0 : i64, scratch_operands = 0 : i64, tpu.core_type = #tpu.core_type<tc>, window_params = [{transform_indices = @transform_0, window_bounds = array<i64: 16, 8>}, {pipeline_mode = #tpu.pipeline_mode<synchronous>, transform_indices = @transform_1, window_bounds = array<i64: 16, 8>}, {pipeline_mode = #tpu.pipeline_mode<synchronous>, transform_indices = @transform_2, window_bounds = array<i64: 16, 1>}, {pipeline_mode = #tpu.pipeline_mode<synchronous>, transform_indices = @transform_3, window_bounds = array<i64: 16, 16>}, {pipeline_mode = #tpu.pipeline_mode<synchronous>, transform_indices = @transform_4, window_bounds = array<i64: 16, 1>}, {pipeline_mode = #tpu.pipeline_mode<synchronous>, transform_indices = @transform_5, window_bounds = array<i64: 4, 16>}, {pipeline_mode = #tpu.pipeline_mode<synchronous>, transform_indices = @transform_6, window_bounds = array<i64: 4, 1>}, {transform_indices = @transform_7, window_bounds = array<i64: 4, 16>}]} {
    %c0 = arith.constant 0 : index
    %c0_0 = arith.constant 0 : index
    %0 = vector.load %arg2[%c0, %c0_0] : memref<16x8xf32, #tpu.memory_space<vmem>>, vector<16x8xf32>
    %c0_1 = arith.constant 0 : index
    %c0_2 = arith.constant 0 : index
    %1 = vector.load %arg1[%c0_1, %c0_2] : memref<16x8xf32, #tpu.memory_space<vmem>>, vector<16x8xf32>
    %cst = arith.constant dense<0.000000e+00> : vector<16x16xf32>
    %2 = tpu.matmul %0, %1, %cst {dimension_numbers = #tpu.dot_dimension_numbers<[1], [1], [0], [0], [0, 0, 1, 0], [], []>} : vector<16x8xf32>, vector<16x8xf32>, vector<16x16xf32> -> vector<16x16xf32>
    %c0_3 = arith.constant 0 : index
    %c0_4 = arith.constant 0 : index
    %3 = vector.load %arg3[%c0_3, %c0_4] : memref<16x1xf32, #tpu.memory_space<vmem>>, vector<16x1xf32>
    %4 = vector.broadcast %3 : vector<16x1xf32> to vector<16x16xf32>
    %5 = arith.addf %2, %4 : vector<16x16xf32>
    %cst_5 = arith.constant 0.000000e+00 : f32
    %6 = vector.broadcast %cst_5 : f32 to vector<16x16xf32>
    %7 = arith.maximumf %5, %6 : vector<16x16xf32>
    %c0_6 = arith.constant 0 : index
    %c0_7 = arith.constant 0 : index
    %8 = vector.load %arg4[%c0_6, %c0_7] : memref<16x16xf32, #tpu.memory_space<vmem>>, vector<16x16xf32>
    %cst_8 = arith.constant dense<0.000000e+00> : vector<16x16xf32>
    %9 = tpu.matmul %8, %7, %cst_8 {dimension_numbers = #tpu.dot_dimension_numbers<[1], [0], [0], [1], [0, 0, 1, 1], [], []>} : vector<16x16xf32>, vector<16x16xf32>, vector<16x16xf32> -> vector<16x16xf32>
    %c0_9 = arith.constant 0 : index
    %c0_10 = arith.constant 0 : index
    %10 = vector.load %arg5[%c0_9, %c0_10] : memref<16x1xf32, #tpu.memory_space<vmem>>, vector<16x1xf32>
    %11 = vector.broadcast %10 : vector<16x1xf32> to vector<16x16xf32>
    %12 = arith.addf %9, %11 : vector<16x16xf32>
    %cst_11 = arith.constant 0.000000e+00 : f32
    %13 = vector.broadcast %cst_11 : f32 to vector<16x16xf32>
    %14 = arith.maximumf %12, %13 : vector<16x16xf32>
    %c0_12 = arith.constant 0 : index
    %c0_13 = arith.constant 0 : index
    %15 = vector.load %arg6[%c0_12, %c0_13] : memref<4x16xf32, #tpu.memory_space<vmem>>, vector<4x16xf32>
    %cst_14 = arith.constant dense<0.000000e+00> : vector<4x16xf32>
    %16 = tpu.matmul %15, %14, %cst_14 {dimension_numbers = #tpu.dot_dimension_numbers<[1], [0], [0], [1], [0, 0, 1, 1], [], []>} : vector<4x16xf32>, vector<16x16xf32>, vector<4x16xf32> -> vector<4x16xf32>
    %c0_15 = arith.constant 0 : index
    %c0_16 = arith.constant 0 : index
    %17 = vector.load %arg7[%c0_15, %c0_16] : memref<4x1xf32, #tpu.memory_space<vmem>>, vector<4x1xf32>
    %18 = vector.broadcast %17 : vector<4x1xf32> to vector<4x16xf32>
    %19 = arith.addf %16, %18 : vector<4x16xf32>
    %c0_17 = arith.constant 0 : index
    %c0_18 = arith.constant 0 : index
    %20 = vector.load %arg8[%c0_17, %c0_18] : memref<4x16xf32, #tpu.memory_space<vmem>>, vector<4x16xf32>
    tpu.vector_store %arg8[%c0_17, %c0_18], %19 {strides = array<i32>} : memref<4x16xf32, #tpu.memory_space<vmem>>, vector<4x16xf32>,
    return
  }
  func.func @transform_0(%arg0: i32) -> (i32, i32) {
    %c0_i32 = arith.constant 0 : i32
    %c0_i32_0 = arith.constant 0 : i32
    return %arg0, %c0_i32 : i32, i32
  }
  func.func @transform_1(%arg0: i32) -> (i32, i32) {
    %c0_i32 = arith.constant 0 : i32
    %c0_i32_0 = arith.constant 0 : i32
    %c0_i32_1 = arith.constant 0 : i32
    return %c0_i32, %c0_i32_0 : i32, i32
  }
  func.func @transform_2(%arg0: i32) -> (i32, i32) {
    %c0_i32 = arith.constant 0 : i32
    %c0_i32_0 = arith.constant 0 : i32
    %c0_i32_1 = arith.constant 0 : i32
    return %c0_i32, %c0_i32_0 : i32, i32
  }
  func.func @transform_3(%arg0: i32) -> (i32, i32) {
    %c0_i32 = arith.constant 0 : i32
    %c0_i32_0 = arith.constant 0 : i32
    %c0_i32_1 = arith.constant 0 : i32
    return %c0_i32, %c0_i32_0 : i32, i32
  }
  func.func @transform_4(%arg0: i32) -> (i32, i32) {
    %c0_i32 = arith.constant 0 : i32
    %c0_i32_0 = arith.constant 0 : i32
    %c0_i32_1 = arith.constant 0 : i32
    return %c0_i32, %c0_i32_0 : i32, i32
  }
  func.func @transform_5(%arg0: i32) -> (i32, i32) {
    %c0_i32 = arith.constant 0 : i32
    %c0_i32_0 = arith.constant 0 : i32
    %c0_i32_1 = arith.constant 0 : i32
    return %c0_i32, %c0_i32_0 : i32, i32
  }
  func.func @transform_6(%arg0: i32) -> (i32, i32) {
    %c0_i32 = arith.constant 0 : i32
    %c0_i32_0 = arith.constant 0 : i32
    %c0_i32_1 = arith.constant 0 : i32
    return %c0_i32, %c0_i32_0 : i32, i32
  }
  func.func @transform_7(%arg0: i32) -> (i32, i32) {
    %c0_i32 = arith.constant 0 : i32
    %c0_i32_0 = arith.constant 0 : i32
    return %c0_i32, %arg0 : i32, i32
  }
}

</mosaic_0001>

<llo_original>
// kernel: tpu_custom_call.1
$region0: #{tpu_custom_call.1}
  #allocation0 [shape = 'u32[]', space=smem, size = 0x4, offset = 0x4, fixed_abs, tag = 'smem constant byte address 0x4 - core index']
  #allocation1 [shape = 'u32[72,128]{1,0:T(1,128)}', space=vmem, size = 0x9000, scoped, tag = 'internal scratch']
  %s0 = inlined_call_operand.vmem [shape: f32[16,8], index: 0, kind: input, shape index: {}]
  %s1 = inlined_call_operand.vmem [shape: f32[16,8], index: 1, kind: input, shape index: {}]
  %s2 = inlined_call_operand.vmem [shape: f32[16,1], index: 2, kind: input, shape index: {}]
  %s3 = inlined_call_operand.vmem [shape: f32[16,16], index: 3, kind: input, shape index: {}]
  %s4 = inlined_call_operand.vmem [shape: f32[16,1], index: 4, kind: input, shape index: {}]
  %s5 = inlined_call_operand.vmem [shape: f32[4,16], index: 5, kind: input, shape index: {}]
  %s6 = inlined_call_operand.vmem [shape: f32[4,1], index: 6, kind: input, shape index: {}]
  %s7 = inlined_call_operand.hbm [shape: f32[4,16], index: 7, kind: output, shape index: {}]
  %s8 = sld [smem:[#allocation0]]
  $region38: #{tpu_custom_call.1} parent=0
    _
  %s10 = ssub.s32 1, %s8
  %s11 = scalar_select 0, %s10, %s8
  $region1: #{tpu_custom_call.1} parent=0
    #allocation2 [shape = 'u8[2048]{0}', space=vmem, size = 0x800, scoped, tag = 'output window, operand 0, single buffered']
    #allocation3 [shape = 's32[1]{0}', space=sflag, size = 0x4, scoped, tag = 'scoped memory for tpu_custom_call.1']
    %12 = vsyncpa [#allocation3], 0
    // Predicated region
    $region2: #{tpu_custom_call.1} parent=1 // pred_check
      _
    $region3: #{tpu_custom_call.1} parent=1 // pred_check_branch
      %14 = sbr.rel (0) target = $region5
    $region4: #{tpu_custom_call.1} parent=1 // pred_region
      _
    $region5: #{tpu_custom_call.1} parent=1 // pred_fallthru
      _
    // Predicated region
    $region6: #{tpu_custom_call.1} parent=1 // pred_check
      _
    $region7: #{tpu_custom_call.1} parent=1 // pred_check_branch
      %16 = sbr.rel (0) target = $region9
    $region8: #{tpu_custom_call.1} parent=1 // pred_region
      _
    $region9: #{tpu_custom_call.1} parent=1 // pred_fallthru
      _
    // Predicated region
    $region10: #{tpu_custom_call.1} parent=1 // pred_check
      _
    $region11: #{tpu_custom_call.1} parent=1 // pred_check_branch
      %18 = sbr.rel (0) target = $region13
    $region12: #{tpu_custom_call.1} parent=1 // pred_region
      _
    $region13: #{tpu_custom_call.1} parent=1 // pred_fallthru
      _
    // Predicated region
    $region14: #{tpu_custom_call.1} parent=1 // pred_check
      _
    $region15: #{tpu_custom_call.1} parent=1 // pred_check_branch
      %20 = sbr.rel (0) target = $region17
    $region16: #{tpu_custom_call.1} parent=1 // pred_region
      _
    $region17: #{tpu_custom_call.1} parent=1 // pred_fallthru
      _
    // Predicated region
    $region18: #{tpu_custom_call.1} parent=1 // pred_check
      _
    $region19: #{tpu_custom_call.1} parent=1 // pred_check_branch
      %22 = sbr.rel (0) target = $region21
    $region20: #{tpu_custom_call.1} parent=1 // pred_region
      _
    $region21: #{tpu_custom_call.1} parent=1 // pred_fallthru
      _
    // Predicated region
    $region22: #{tpu_custom_call.1} parent=1 // pred_check
      _
    $region23: #{tpu_custom_call.1} parent=1 // pred_check_branch
      %24 = sbr.rel (0) target = $region25
    $region24: #{tpu_custom_call.1} parent=1 // pred_region
      _
    $region25: #{tpu_custom_call.1} parent=1 // pred_fallthru
      _
    // Predicated region
    $region26: #{tpu_custom_call.1} parent=1 // pred_check
      _
    $region27: #{tpu_custom_call.1} parent=1 // pred_check_branch
      %26 = sbr.rel (0) target = $region29
    $region28: #{tpu_custom_call.1} parent=1 // pred_region
      _
    $region29: #{tpu_custom_call.1} parent=1 // pred_fallthru
      _
    %v27 = vld [vmem:[%s1] sm:$0xff]
    %v28 = vld [vmem:[%s1 + $0x8] sm:$0xff]
    %v29 = vld [vmem:[%s0] sm:$0xff]
    %v30 = vld [vmem:[%s0 + $0x8] sm:$0xff]
    %v31 = vld [vmem:[%s2] sm:$0xff]
    %v32 = vld [vmem:[%s2 + $0x8] sm:$0xff]
    %34 = vset.pattern.permute.xlu0 0
    %35 = vperm.xlu0 %34, %v31
    %v36 = vpop.permute.xlu0 %35
    %39 = vset.pattern.permute.xlu0 0
    %40 = vperm.xlu0 %39, %v32
    %v41 = vpop.permute.xlu0 %40
    %vm43 = vcmask 64512
    %v45 = vsel %vm43, %v27, 0
    %v48 = vsel %vm43, %v28, 0
    %v51 = vsel %vm43, %v29, 0
    %v54 = vsel %vm43, %v30, 0
    %56 = vmatpush.xpose.msra.mxu0 0.0
    %57 = vmatpush.xpose.msra.mxu0 0.0
    %58 = vmatpush.xpose.msra.mxu0 0.0
    %59 = vmatpush.xpose.msra.mxu0 0.0
    %60 = vmatpush.xpose.msra.mxu0 0.0
    %61 = vmatpush.xpose.msra.mxu0 0.0
    %62 = vmatpush.xpose.msra.mxu0 0.0
    %63 = vmatpush.xpose.msra.mxu0 0.0
    %64 = vmatpush.xpose.msra.mxu0 0.0
    %65 = vmatpush.xpose.msra.mxu0 0.0
    %66 = vmatpush.xpose.msra.mxu0 0.0
    %67 = vmatpush.xpose.msra.mxu0 0.0
    %68 = vmatpush.xpose.msra.mxu0 0.0
    %69 = vmatpush.xpose.msra.mxu0 0.0
    %70 = vmatpush.xpose.msra.mxu0 %v54
    %71 = vmatpush.xpose.msra.mxu0 %v51
    %72 = vmatmul.f32.gmra.mxu0 %v45
    %v73 = vpop.f32.mrf.mxu0
    %v74 = vadd.f32 %v36, %v73
    %75 = vmatmul.f32.gmra.mxu0 %v48
    %v76 = vpop.f32.mrf.mxu0
    %v77 = vadd.f32 %v41, %v76
    %78 = vdwg.mxu0
    %v79 = vmax.f32 %v74, 0.0
    %v80 = vmax.f32 %v77, 0.0
    %v81 = vld [vmem:[%s3] sm:$0xff]
    %v82 = vld [vmem:[%s3 + $0x8] sm:$0xff]
    %v83 = vld [vmem:[%s4] sm:$0xff]
    %v84 = vld [vmem:[%s4 + $0x8] sm:$0xff]
    %86 = vset.pattern.permute.xlu0 0
    %87 = vperm.xlu0 %86, %v83
    %v88 = vpop.permute.xlu0 %87
    %91 = vset.pattern.permute.xlu0 0
    %92 = vperm.xlu0 %91, %v84
    %v93 = vpop.permute.xlu0 %92
    %vm95 = vcmask 130048
    %v97 = vsel %vm95, %v81, 0
    %v100 = vsel %vm95, %v82, 0
    %102 = vmatpush.msra.mxu0 0.0
    %103 = vmatpush.msra.mxu0 0.0
    %104 = vmatpush.msra.mxu0 0.0
    %105 = vmatpush.msra.mxu0 0.0
    %106 = vmatpush.msra.mxu0 0.0
    %107 = vmatpush.msra.mxu0 0.0
    %108 = vmatpush.msra.mxu0 0.0
    %109 = vmatpush.msra.mxu0 0.0
    %110 = vmatpush.msra.mxu0 0.0
    %111 = vmatpush.msra.mxu0 0.0
    %112 = vmatpush.msra.mxu0 0.0
    %113 = vmatpush.msra.mxu0 0.0
    %114 = vmatpush.msra.mxu0 0.0
    %115 = vmatpush.msra.mxu0 0.0
    %116 = vmatpush.msra.mxu0 %v80
    %117 = vmatpush.msra.mxu0 %v79
    %118 = vmatmul.f32.gmra.mxu0 %v97
    %v119 = vpop.f32.mrf.mxu0
    %v120 = vadd.f32 %v88, %v119
    %121 = vmatmul.f32.gmra.mxu0 %v100
    %v122 = vpop.f32.mrf.mxu0
    %v123 = vadd.f32 %v93, %v122
    %124 = vdwg.mxu0
    %v125 = vmax.f32 %v120, 0.0
    %v126 = vmax.f32 %v123, 0.0
    %v127 = vld [vmem:[%s5] sm:$0xf]
    %v128 = vld [vmem:[%s6] sm:$0xf]
    %130 = vset.pattern.permute.xlu0 0
    %131 = vperm.xlu0 %130, %v128
    %v132 = vpop.permute.xlu0 %131
    %v135 = vsel %vm95, %v127, 0
    %137 = vmatpush.msra.mxu0 0.0
    %138 = vmatpush.msra.mxu0 0.0
    %139 = vmatpush.msra.mxu0 0.0
    %140 = vmatpush.msra.mxu0 0.0
    %141 = vmatpush.msra.mxu0 0.0
    %142 = vmatpush.msra.mxu0 0.0
    %143 = vmatpush.msra.mxu0 0.0
    %144 = vmatpush.msra.mxu0 0.0
    %145 = vmatpush.msra.mxu0 0.0
    %146 = vmatpush.msra.mxu0 0.0
    %147 = vmatpush.msra.mxu0 0.0
    %148 = vmatpush.msra.mxu0 0.0
    %149 = vmatpush.msra.mxu0 0.0
    %150 = vmatpush.msra.mxu0 0.0
    %151 = vmatpush.msra.mxu0 %v126
    %152 = vmatpush.msra.mxu0 %v125
    %153 = vmatmul.f32.gmra.mxu0 %v135
    %v154 = vpop.f32.mrf.mxu0
    %v155 = vadd.f32 %v132, %v154
    %156 = vdwg.mxu0
    %vm157 = vcmask 125952
    %158 = vst.msk [vmem:[#allocation2] sm:$0xf] %vm157, %v155
    // Predicated region
    $region30: #{tpu_custom_call.1} parent=1 // pred_check
      _
    $region31: #{tpu_custom_call.1} parent=1 // pred_check_branch
      %160 = sbr.rel (0) target = $region33
    $region32: #{tpu_custom_call.1} parent=1 // pred_region
      %162 = vsyncadd [#allocation3], 0
      %s164 = sshll.u32 [#allocation2], 4
      %s165 = int_to_ptr.vmem [resolvable:$true] %s164
      %s166 = sshll.u32 %s7, 4
      %s167 = int_to_ptr.hbm [resolvable:$true] %s166
      %169 = dma.vmem_to_hbm [thread:$0]  %s165, 64, %s167, [#allocation3]
    $region33: #{tpu_custom_call.1} parent=1 // pred_fallthru
      _
    // Predicated region
    $region34: #{tpu_custom_call.1} parent=1 // pred_check
      _
    $region35: #{tpu_custom_call.1} parent=1 // pred_check_branch
      %171 = sbr.rel (0) target = $region37
    $region36: #{tpu_custom_call.1} parent=1 // pred_region
      %173 = dma.done [#allocation3], 64
    $region37: #{tpu_custom_call.1} parent=1 // pred_fallthru
      _
    %174 = vsyncpa [#allocation3], 1

</llo_original>
